<compile_context>
chip_gen: v5e
topology: v5e:2x2
jax: 0.10.0
libtpu: 0.0.40
codegen_flags: <defaults>
</compile_context>

<pallas_src>
import functools
import math

import jax
import jax.numpy as jnp
from jax import lax
from jax.experimental import pallas as pl
from jax.experimental.pallas import tpu as pltpu

BN_EPS = 1e-5  # torch.nn.BatchNorm1d default eps
BN_SCALE = 1.0 / math.sqrt(1.0 + BN_EPS)


def _round_up(x, m):
    return ((x + m - 1) // m) * m


def scoring_kernel(t_ref, e_ref, scale_ref, b_ref, out_ref):
    """One grid step scores the resident (B, 2D) transformed batch against a (TN, 2D)
    int8 entity tile.  int8 is a pure HBM-stream format: cast to bf16 in VMEM, single
    transpose-free contraction on the shared last (lane) dim, f32 accumulation, then
    per-entity dequant scale + bias and a bf16 sigmoid / bf16 writeback."""
    e = e_ref[...].astype(jnp.bfloat16)                    # int8 -> bf16 (exact, VPU)
    score = lax.dot_general(
        t_ref[...], e,
        dimension_numbers=(((1,), (1,)), ((), ())),
        preferred_element_type=jnp.float32)                # (B, TN) f32 accumulator
    z = (score * scale_ref[...] + b_ref[...]).astype(jnp.bfloat16)
    out_ref[...] = jax.nn.sigmoid(z)


def prepare_entity_table(e_re, e_im):
    """Precompute once per table update: per-entity symmetric int8 quantization of the
    concatenated [E_re | E_im] table (halves the dominant HBM read stream)."""
    e_cat = jnp.concatenate([e_re, e_im], axis=1)                   # (N, 2D) f32
    row_max = jnp.max(jnp.abs(e_cat), axis=1, keepdims=True)        # (N, 1)
    scale = jnp.maximum(row_max, 1e-12) / 127.0
    e_q = jnp.clip(jnp.round(e_cat / scale), -127, 127).astype(jnp.int8)
    return e_q, scale[:, 0].astype(jnp.float32)                     # (N, 2D) int8, (N,) f32


def mobius_transform(h_re, h_im, r_list):
    """Mobius transform t = (h*r_a + r_b) / (h*r_c + r_d) in plain JAX (tiny elementwise
    chain; XLA fuses it inside the same jit as the scoring kernel).  The eval-mode
    BatchNorm scale of the entity table is distributed over the dot product and folded
    into t here.  Returns the concatenated [t_re | t_im] block in bf16."""
    ra_re, ra_im, rb_re, rb_im, rc_re, rc_im, rd_re, rd_im = r_list
    top_re = h_re * ra_re - h_im * ra_im + rb_re
    top_im = h_re * ra_im + h_im * ra_re + rb_im
    bot_re = h_re * rc_re - h_im * rc_im + rd_re
    bot_im = h_re * rc_im + h_im * rc_re + rd_im
    inv = jnp.float32(BN_SCALE) / (bot_re * bot_re + bot_im * bot_im)  # exact divide
    t_re = (top_re * bot_re + top_im * bot_im) * inv
    t_im = (top_im * bot_re - top_re * bot_im) * inv
    return jnp.concatenate([t_re, t_im], axis=-1).astype(jnp.bfloat16)  # (B, 2D)


@functools.partial(jax.jit, static_argnames=("tile_n",))
def mobius_e_forward(h_re, h_im, r_list, e_q, e_scale, bias, tile_n=8192):
    """h_re/h_im: (B, D) gathered head embeddings; r_list: 8 arrays (B, D);
    e_q: (N, 2D) int8 entity table; e_scale: (N,) dequant scale; bias: (N,).
    Returns (B, N) bf16 sigmoid scores."""
    B, D = h_re.shape
    N, D2 = e_q.shape
    assert D2 == 2 * D

    # Stage 1 (fused into this jit): Mobius transform + BN fold + bf16 cast.
    t_cat = mobius_transform(h_re, h_im, list(r_list))

    # Entity-axis tiling: big lane-dense tiles, cdiv grid + zero-padding of the last tile
    # so arbitrary entity counts work with large tile_n.
    tile_n = min(tile_n, _round_up(N, 128))
    tile_n = max(128, (tile_n // 128) * 128)
    n_tiles = -(-N // tile_n)
    n_pad = n_tiles * tile_n
    if n_pad != N:
        pad = n_pad - N
        e_q = jnp.pad(e_q, ((0, pad), (0, 0)))
        e_scale = jnp.pad(e_scale, (0, pad))
        bias = jnp.pad(bias, (0, pad))

    scale2d = e_scale.reshape(1, n_pad).astype(jnp.float32)
    bias2d = bias.reshape(1, n_pad).astype(jnp.float32)

    grid_spec = pltpu.PrefetchScalarGridSpec(
        num_scalar_prefetch=0,
        grid=(n_tiles,),
        in_specs=[
            pl.BlockSpec((B, 2 * D), lambda j: (0, 0)),        # t resident across the grid
            pl.BlockSpec((tile_n, 2 * D), lambda j: (j, 0)),   # int8 entity tile (HBM stream)
            pl.BlockSpec((1, tile_n), lambda j: (0, j)),       # per-entity dequant scale
            pl.BlockSpec((1, tile_n), lambda j: (0, j)),       # bias tile
        ],
        out_specs=pl.BlockSpec((B, tile_n), lambda j: (0, j)),
    )

    out = pl.pallas_call(
        scoring_kernel,
        out_shape=jax.ShapeDtypeStruct((B, n_pad), jnp.bfloat16),
        grid_spec=grid_spec,
        compiler_params=pltpu.CompilerParams(
            # entity axis shards across the 2 TensorCores on v7x; no-op on v5e/v6e
            dimension_semantics=("parallel",),
            # explicit scoped-VMEM limit: v5e default is only 16 MiB
            vmem_limit_bytes=32 * 1024 * 1024),
    )(t_cat, e_q, scale2d, bias2d)

    return out[:, :N]


def reference_forward(h_re, h_im, r_list, e_re, e_im, bias):
    ra_re, ra_im, rb_re, rb_im, rc_re, rc_im, rd_re, rd_im = r_list
    top_re = h_re * ra_re - h_im * ra_im + rb_re
    top_im = h_re * ra_im + h_im * ra_re + rb_im
    bot_re = h_re * rc_re - h_im * rc_im + rd_re
    bot_im = h_re * rc_im + h_im * rc_re + rd_im
    denom = bot_re ** 2 + bot_im ** 2
    t_re = (top_re * bot_re + top_im * bot_im) / denom
    t_im = (top_im * bot_re - top_re * bot_im) / denom
    bn = 1.0 / jnp.sqrt(1.0 + BN_EPS)
    score = t_re @ (e_re * bn).T + t_im @ (e_im * bn).T + bias[None, :]
    return jax.nn.sigmoid(score)


if __name__ == "__main__":
    num_entities = 1024
    num_relations = 16
    embedding_dim = 32
    batch = 8

    key = jax.random.PRNGKey(0)
    keys = jax.random.split(key, 12)

    # ComplexEmbedding(num_entities, embedding_dim, 2): two real tables (re, im).
    e_re = jax.random.normal(keys[0], (num_entities, embedding_dim), jnp.float32) * 0.1
    e_im = jax.random.normal(keys[1], (num_entities, embedding_dim), jnp.float32) * 0.1

    # MobiusEmbedding(num_relations, embedding_dim, 4): four complex tables (a, b, c, d).
    rel_tables = [
        jax.random.normal(keys[2 + i], (num_relations, embedding_dim), jnp.float32) * 0.1 + 0.1
        for i in range(8)
    ]

    # self.b = nn.Parameter(torch.zeros(num_entities))
    bias = jnp.zeros((num_entities,), jnp.float32)

    h_idx = jax.random.randint(keys[10], (batch,), 0, num_entities)
    r_idx = jax.random.randint(keys[11], (batch,), 0, num_relations)

    # Embedding lookups (glue, plain JAX gather).
    h_re = e_re[h_idx]
    h_im = e_im[h_idx]
    r_list = [tbl[r_idx] for tbl in rel_tables]

    # Quantize + concatenate the entity table once (would be cached for a real model).
    e_q, e_scale = prepare_entity_table(e_re, e_im)

    out = mobius_e_forward(h_re, h_im, r_list, e_q, e_scale, bias, tile_n=8192)
    out = jax.block_until_ready(out)

    ref = reference_forward(h_re, h_im, r_list, e_re, e_im, bias)
    assert out.shape == (batch, num_entities)
    # int8 entity stream + bf16 t / bf16 sigmoid + bf16 output => loosened tolerance
    # (f32 MXU accumulation, exact Mobius divide; error measured after sigmoid).
    max_err = float(jnp.max(jnp.abs(out.astype(jnp.float32) - ref)))
    assert max_err < 5e-2, f"mismatch vs reference, max_err={max_err}"

    print("KERNEL_OK")
</pallas_src>

<mosaic_0001>
module attributes {stable_mosaic.version = 11 : i64} {
  func.func @scoring_kernel(%arg0: i32, %arg1: memref<8x64xbf16, #tpu.memory_space<vmem>>, %arg2: memref<1024x64xi8, #tpu.memory_space<vmem>>, %arg3: memref<1x1024xf32, #tpu.memory_space<vmem>>, %arg4: memref<1x1024xf32, #tpu.memory_space<vmem>>, %arg5: memref<8x1024xbf16, #tpu.memory_space<vmem>>) attributes {dimension_semantics = [#tpu.dimension_semantics<parallel>], iteration_bounds = array<i64: 1>, scalar_prefetch = 0 : i64, scratch_operands = 0 : i64, tpu.core_type = #tpu.core_type<tc>, window_params = [{pipeline_mode = #tpu.pipeline_mode<synchronous>, transform_indices = @transform_0, window_bounds = array<i64: 8, 64>}, {transform_indices = @transform_1, window_bounds = array<i64: 1024, 64>}, {transform_indices = @transform_2, window_bounds = array<i64: 1, 1024>}, {transform_indices = @transform_3, window_bounds = array<i64: 1, 1024>}, {transform_indices = @transform_4, window_bounds = array<i64: 8, 1024>}]} {
    %c0 = arith.constant 0 : index
    %c0_0 = arith.constant 0 : index
    %0 = vector.load %arg2[%c0, %c0_0] : memref<1024x64xi8, #tpu.memory_space<vmem>>, vector<1024x64xi8>
    %1 = arith.sitofp %0 : vector<1024x64xi8> to vector<1024x64xbf16>
    %c0_1 = arith.constant 0 : index
    %c0_2 = arith.constant 0 : index
    %2 = vector.load %arg1[%c0_1, %c0_2] : memref<8x64xbf16, #tpu.memory_space<vmem>>, vector<8x64xbf16>
    %cst = arith.constant dense<0.000000e+00> : vector<8x1024xf32>
    %3 = tpu.matmul %2, %1, %cst {dimension_numbers = #tpu.dot_dimension_numbers<[1], [1], [0], [0], [0, 0, 1, 0], [], []>} : vector<8x64xbf16>, vector<1024x64xbf16>, vector<8x1024xf32> -> vector<8x1024xf32>
    %c0_3 = arith.constant 0 : index
    %c0_4 = arith.constant 0 : index
    %4 = vector.load %arg3[%c0_3, %c0_4] : memref<1x1024xf32, #tpu.memory_space<vmem>>, vector<1x1024xf32>
    %5 = vector.broadcast %4 : vector<1x1024xf32> to vector<8x1024xf32>
    %6 = arith.mulf %3, %5 : vector<8x1024xf32>
    %c0_5 = arith.constant 0 : index
    %c0_6 = arith.constant 0 : index
    %7 = vector.load %arg4[%c0_5, %c0_6] : memref<1x1024xf32, #tpu.memory_space<vmem>>, vector<1x1024xf32>
    %8 = vector.broadcast %7 : vector<1x1024xf32> to vector<8x1024xf32>
    %9 = arith.addf %6, %8 : vector<8x1024xf32>
    %10 = arith.truncf %9 : vector<8x1024xf32> to vector<8x1024xbf16>
    %11 = arith.negf %10 : vector<8x1024xbf16>
    %12 = math.exp %11 : vector<8x1024xbf16>
    %cst_7 = arith.constant 1.000000e+00 : bf16
    %13 = vector.broadcast %cst_7 : bf16 to vector<8x1024xbf16>
    %14 = arith.addf %13, %12 : vector<8x1024xbf16>
    %15 = arith.divf %13, %14 : vector<8x1024xbf16>
    %c0_8 = arith.constant 0 : index
    %c0_9 = arith.constant 0 : index
    %16 = vector.load %arg5[%c0_8, %c0_9] : memref<8x1024xbf16, #tpu.memory_space<vmem>>, vector<8x1024xbf16>
    tpu.vector_store %arg5[%c0_8, %c0_9], %15 {strides = array<i32>} : memref<8x1024xbf16, #tpu.memory_space<vmem>>, vector<8x1024xbf16>,
    return
  }
  func.func @transform_0(%arg0: i32) -> (i32, i32) {
    %c0_i32 = arith.constant 0 : i32
    %c0_i32_0 = arith.constant 0 : i32
    %c0_i32_1 = arith.constant 0 : i32
    return %c0_i32, %c0_i32_0 : i32, i32
  }
  func.func @transform_1(%arg0: i32) -> (i32, i32) {
    %c0_i32 = arith.constant 0 : i32
    %c0_i32_0 = arith.constant 0 : i32
    return %arg0, %c0_i32 : i32, i32
  }
  func.func @transform_2(%arg0: i32) -> (i32, i32) {
    %c0_i32 = arith.constant 0 : i32
    %c0_i32_0 = arith.constant 0 : i32
    return %c0_i32, %arg0 : i32, i32
  }
  func.func @transform_3(%arg0: i32) -> (i32, i32) {
    %c0_i32 = arith.constant 0 : i32
    %c0_i32_0 = arith.constant 0 : i32
    return %c0_i32, %arg0 : i32, i32
  }
  func.func @transform_4(%arg0: i32) -> (i32, i32) {
    %c0_i32 = arith.constant 0 : i32
    %c0_i32_0 = arith.constant 0 : i32
    return %c0_i32, %arg0 : i32, i32
  }
}

</mosaic_0001>

<llo_original>
// kernel: mobius_e_forward.1
$region0: #{mobius_e_forward.1}
  #allocation0 [shape = 'u32[]', space=smem, size = 0x4, offset = 0x4, fixed_abs, tag = 'smem constant byte address 0x4 - core index']
  #allocation1 [shape = 'u32[72,128]{1,0:T(1,128)}', space=vmem, size = 0x9000, scoped, tag = 'internal scratch']
  %s0 = inlined_call_operand.vmem [shape: bf16[8,64], index: 0, kind: input, shape index: {}]
  %s1 = inlined_call_operand.vmem [shape: s8[1024,64], index: 1, kind: input, shape index: {}]
  %s2 = inlined_call_operand.vmem [shape: f32[1,1024], index: 2, kind: input, shape index: {}]
  %s3 = inlined_call_operand.vmem [shape: f32[1,1024], index: 3, kind: input, shape index: {}]
  %s4 = inlined_call_operand.hbm [shape: bf16[8,1024], index: 4, kind: output, shape index: {}]
  %s5 = sld [smem:[#allocation0]]
  $region26: #{mobius_e_forward.1} parent=0
    _
  %s7 = ssub.s32 1, %s5
  %s8 = scalar_select 0, %s7, %s5
  $region1: #{mobius_e_forward.1} parent=0
    #allocation2 [shape = 'u8[16384]{0}', space=vmem, size = 0x4000, scoped, tag = 'output window, operand 0, single buffered']
    #allocation3 [shape = 's32[1]{0}', space=sflag, size = 0x4, scoped, tag = 'scoped memory for mobius_e_forward.1']
    %9 = vsyncpa [#allocation3], 0
    // Predicated region
    $region2: #{mobius_e_forward.1} parent=1 // pred_check
      _
    $region3: #{mobius_e_forward.1} parent=1 // pred_check_branch
      %11 = sbr.rel (0) target = $region5
    $region4: #{mobius_e_forward.1} parent=1 // pred_region
      _
    $region5: #{mobius_e_forward.1} parent=1 // pred_fallthru
      _
    // Predicated region
    $region6: #{mobius_e_forward.1} parent=1 // pred_check
      _
    $region7: #{mobius_e_forward.1} parent=1 // pred_check_branch
      %13 = sbr.rel (0) target = $region9
    $region8: #{mobius_e_forward.1} parent=1 // pred_region
      _
    $region9: #{mobius_e_forward.1} parent=1 // pred_fallthru
      _
    // Predicated region
    $region10: #{mobius_e_forward.1} parent=1 // pred_check
      _
    $region11: #{mobius_e_forward.1} parent=1 // pred_check_branch
      %15 = sbr.rel (0) target = $region13
    $region12: #{mobius_e_forward.1} parent=1 // pred_region
      _
    $region13: #{mobius_e_forward.1} parent=1 // pred_fallthru
      _
    // Predicated region
    $region14: #{mobius_e_forward.1} parent=1 // pred_check
      _
    $region15: #{mobius_e_forward.1} parent=1 // pred_check_branch
      %17 = sbr.rel (0) target = $region17
    $region16: #{mobius_e_forward.1} parent=1 // pred_region
      _
    $region17: #{mobius_e_forward.1} parent=1 // pred_fallthru
      _
    %v19 = vld [vmem:[%s1] sm:$0xff]
    %v20 = vld [vmem:[%s1 + $0x8] sm:$0xff]
    %v21 = vld [vmem:[%s1 + $0x10] sm:$0xff]
    %v22 = vld [vmem:[%s1 + $0x18] sm:$0xff]
    %v23 = vld [vmem:[%s1 + $0x20] sm:$0xff]
    %v24 = vld [vmem:[%s1 + $0x28] sm:$0xff]
    %v25 = vld [vmem:[%s1 + $0x30] sm:$0xff]
    %v26 = vld [vmem:[%s1 + $0x38] sm:$0xff]
    %v27 = vld [vmem:[%s1 + $0x40] sm:$0xff]
    %v28 = vld [vmem:[%s1 + $0x48] sm:$0xff]
    %v29 = vld [vmem:[%s1 + $0x50] sm:$0xff]
    %v30 = vld [vmem:[%s1 + $0x58] sm:$0xff]
    %v31 = vld [vmem:[%s1 + $0x60] sm:$0xff]
    %v32 = vld [vmem:[%s1 + $0x68] sm:$0xff]
    %v33 = vld [vmem:[%s1 + $0x70] sm:$0xff]
    %v34 = vld [vmem:[%s1 + $0x78] sm:$0xff]
    %v35 = vld [vmem:[%s1 + $0x80] sm:$0xff]
    %v36 = vld [vmem:[%s1 + $0x88] sm:$0xff]
    %v37 = vld [vmem:[%s1 + $0x90] sm:$0xff]
    %v38 = vld [vmem:[%s1 + $0x98] sm:$0xff]
    %v39 = vld [vmem:[%s1 + $0xa0] sm:$0xff]
    %v40 = vld [vmem:[%s1 + $0xa8] sm:$0xff]
    %v41 = vld [vmem:[%s1 + $0xb0] sm:$0xff]
    %v42 = vld [vmem:[%s1 + $0xb8] sm:$0xff]
    %v43 = vld [vmem:[%s1 + $0xc0] sm:$0xff]
    %v44 = vld [vmem:[%s1 + $0xc8] sm:$0xff]
    %v45 = vld [vmem:[%s1 + $0xd0] sm:$0xff]
    %v46 = vld [vmem:[%s1 + $0xd8] sm:$0xff]
    %v47 = vld [vmem:[%s1 + $0xe0] sm:$0xff]
    %v48 = vld [vmem:[%s1 + $0xe8] sm:$0xff]
    %v49 = vld [vmem:[%s1 + $0xf0] sm:$0xff]
    %v50 = vld [vmem:[%s1 + $0xf8] sm:$0xff]
    %v51 = vunpack.c.0.s8 %v19
    %v52 = vunpack.c.1.s8 %v19
    %v53 = vunpack.c.2.s8 %v19
    %v54 = vunpack.c.3.s8 %v19
    %v55 = vunpack.c.0.s8 %v20
    %v56 = vunpack.c.1.s8 %v20
    %v57 = vunpack.c.2.s8 %v20
    %v58 = vunpack.c.3.s8 %v20
    %v59 = vunpack.c.0.s8 %v21
    %v60 = vunpack.c.1.s8 %v21
    %v61 = vunpack.c.2.s8 %v21
    %v62 = vunpack.c.3.s8 %v21
    %v63 = vunpack.c.0.s8 %v22
    %v64 = vunpack.c.1.s8 %v22
    %v65 = vunpack.c.2.s8 %v22
    %v66 = vunpack.c.3.s8 %v22
    %v67 = vunpack.c.0.s8 %v23
    %v68 = vunpack.c.1.s8 %v23
    %v69 = vunpack.c.2.s8 %v23
    %v70 = vunpack.c.3.s8 %v23
    %v71 = vunpack.c.0.s8 %v24
    %v72 = vunpack.c.1.s8 %v24
    %v73 = vunpack.c.2.s8 %v24
    %v74 = vunpack.c.3.s8 %v24
    %v75 = vunpack.c.0.s8 %v25
    %v76 = vunpack.c.1.s8 %v25
    %v77 = vunpack.c.2.s8 %v25
    %v78 = vunpack.c.3.s8 %v25
    %v79 = vunpack.c.0.s8 %v26
    %v80 = vunpack.c.1.s8 %v26
    %v81 = vunpack.c.2.s8 %v26
    %v82 = vunpack.c.3.s8 %v26
    %v83 = vunpack.c.0.s8 %v27
    %v84 = vunpack.c.1.s8 %v27
    %v85 = vunpack.c.2.s8 %v27
    %v86 = vunpack.c.3.s8 %v27
    %v87 = vunpack.c.0.s8 %v28
    %v88 = vunpack.c.1.s8 %v28
    %v89 = vunpack.c.2.s8 %v28
    %v90 = vunpack.c.3.s8 %v28
    %v91 = vunpack.c.0.s8 %v29
    %v92 = vunpack.c.1.s8 %v29
    %v93 = vunpack.c.2.s8 %v29
    %v94 = vunpack.c.3.s8 %v29
    %v95 = vunpack.c.0.s8 %v30
    %v96 = vunpack.c.1.s8 %v30
    %v97 = vunpack.c.2.s8 %v30
    %v98 = vunpack.c.3.s8 %v30
    %v99 = vunpack.c.0.s8 %v31
    %v100 = vunpack.c.1.s8 %v31
    %v101 = vunpack.c.2.s8 %v31
    %v102 = vunpack.c.3.s8 %v31
    %v103 = vunpack.c.0.s8 %v32
    %v104 = vunpack.c.1.s8 %v32
    %v105 = vunpack.c.2.s8 %v32
    %v106 = vunpack.c.3.s8 %v32
    %v107 = vunpack.c.0.s8 %v33
    %v108 = vunpack.c.1.s8 %v33
    %v109 = vunpack.c.2.s8 %v33
    %v110 = vunpack.c.3.s8 %v33
    %v111 = vunpack.c.0.s8 %v34
    %v112 = vunpack.c.1.s8 %v34
    %v113 = vunpack.c.2.s8 %v34
    %v114 = vunpack.c.3.s8 %v34
    %v115 = vunpack.c.0.s8 %v35
    %v116 = vunpack.c.1.s8 %v35
    %v117 = vunpack.c.2.s8 %v35
    %v118 = vunpack.c.3.s8 %v35
    %v119 = vunpack.c.0.s8 %v36
    %v120 = vunpack.c.1.s8 %v36
    %v121 = vunpack.c.2.s8 %v36
    %v122 = vunpack.c.3.s8 %v36
    %v123 = vunpack.c.0.s8 %v37
    %v124 = vunpack.c.1.s8 %v37
    %v125 = vunpack.c.2.s8 %v37
    %v126 = vunpack.c.3.s8 %v37
    %v127 = vunpack.c.0.s8 %v38
    %v128 = vunpack.c.1.s8 %v38
    %v129 = vunpack.c.2.s8 %v38
    %v130 = vunpack.c.3.s8 %v38
    %v131 = vunpack.c.0.s8 %v39
    %v132 = vunpack.c.1.s8 %v39
    %v133 = vunpack.c.2.s8 %v39
    %v134 = vunpack.c.3.s8 %v39
    %v135 = vunpack.c.0.s8 %v40
    %v136 = vunpack.c.1.s8 %v40
    %v137 = vunpack.c.2.s8 %v40
    %v138 = vunpack.c.3.s8 %v40
    %v139 = vunpack.c.0.s8 %v41
    %v140 = vunpack.c.1.s8 %v41
    %v141 = vunpack.c.2.s8 %v41
    %v142 = vunpack.c.3.s8 %v41
    %v143 = vunpack.c.0.s8 %v42
    %v144 = vunpack.c.1.s8 %v42
    %v145 = vunpack.c.2.s8 %v42
    %v146 = vunpack.c.3.s8 %v42
    %v147 = vunpack.c.0.s8 %v43
    %v148 = vunpack.c.1.s8 %v43
    %v149 = vunpack.c.2.s8 %v43
    %v150 = vunpack.c.3.s8 %v43
    %v151 = vunpack.c.0.s8 %v44
    %v152 = vunpack.c.1.s8 %v44
    %v153 = vunpack.c.2.s8 %v44
    %v154 = vunpack.c.3.s8 %v44
    %v155 = vunpack.c.0.s8 %v45
    %v156 = vunpack.c.1.s8 %v45
    %v157 = vunpack.c.2.s8 %v45
    %v158 = vunpack.c.3.s8 %v45
    %v159 = vunpack.c.0.s8 %v46
    %v160 = vunpack.c.1.s8 %v46
    %v161 = vunpack.c.2.s8 %v46
    %v162 = vunpack.c.3.s8 %v46
    %v163 = vunpack.c.0.s8 %v47
    %v164 = vunpack.c.1.s8 %v47
    %v165 = vunpack.c.2.s8 %v47
    %v166 = vunpack.c.3.s8 %v47
    %v167 = vunpack.c.0.s8 %v48
    %v168 = vunpack.c.1.s8 %v48
    %v169 = vunpack.c.2.s8 %v48
    %v170 = vunpack.c.3.s8 %v48
    %v171 = vunpack.c.0.s8 %v49
    %v172 = vunpack.c.1.s8 %v49
    %v173 = vunpack.c.2.s8 %v49
    %v174 = vunpack.c.3.s8 %v49
    %v175 = vunpack.c.0.s8 %v50
    %v176 = vunpack.c.1.s8 %v50
    %v177 = vunpack.c.2.s8 %v50
    %v178 = vunpack.c.3.s8 %v50
    %v179 = vcvt.s32.f32 %v51
    %v180 = vcvt.s32.f32 %v52
    %v181 = vcvt.s32.f32 %v53
    %v182 = vcvt.s32.f32 %v54
    %v183 = vcvt.s32.f32 %v55
    %v184 = vcvt.s32.f32 %v56
    %v185 = vcvt.s32.f32 %v57
    %v186 = vcvt.s32.f32 %v58
    %v187 = vcvt.s32.f32 %v59
    %v188 = vcvt.s32.f32 %v60
    %v189 = vcvt.s32.f32 %v61
    %v190 = vcvt.s32.f32 %v62
    %v191 = vcvt.s32.f32 %v63
    %v192 = vcvt.s32.f32 %v64
    %v193 = vcvt.s32.f32 %v65
    %v194 = vcvt.s32.f32 %v66
    %v195 = vcvt.s32.f32 %v67
    %v196 = vcvt.s32.f32 %v68
    %v197 = vcvt.s32.f32 %v69
    %v198 = vcvt.s32.f32 %v70
    %v199 = vcvt.s32.f32 %v71
    %v200 = vcvt.s32.f32 %v72
    %v201 = vcvt.s32.f32 %v73
    %v202 = vcvt.s32.f32 %v74
    %v203 = vcvt.s32.f32 %v75
    %v204 = vcvt.s32.f32 %v76
    %v205 = vcvt.s32.f32 %v77
    %v206 = vcvt.s32.f32 %v78
    %v207 = vcvt.s32.f32 %v79
    %v208 = vcvt.s32.f32 %v80
    %v209 = vcvt.s32.f32 %v81
    %v210 = vcvt.s32.f32 %v82
    %v211 = vcvt.s32.f32 %v83
    %v212 = vcvt.s32.f32 %v84
    %v213 = vcvt.s32.f32 %v85
    %v214 = vcvt.s32.f32 %v86
    %v215 = vcvt.s32.f32 %v87
    %v216 = vcvt.s32.f32 %v88
    %v217 = vcvt.s32.f32 %v89
    %v218 = vcvt.s32.f32 %v90
    %v219 = vcvt.s32.f32 %v91
    %v220 = vcvt.s32.f32 %v92
    %v221 = vcvt.s32.f32 %v93
    %v222 = vcvt.s32.f32 %v94
    %v223 = vcvt.s32.f32 %v95
    %v224 = vcvt.s32.f32 %v96
    %v225 = vcvt.s32.f32 %v97
    %v226 = vcvt.s32.f32 %v98
    %v227 = vcvt.s32.f32 %v99
    %v228 = vcvt.s32.f32 %v100
    %v229 = vcvt.s32.f32 %v101
    %v230 = vcvt.s32.f32 %v102
    %v231 = vcvt.s32.f32 %v103
    %v232 = vcvt.s32.f32 %v104
    %v233 = vcvt.s32.f32 %v105
    %v234 = vcvt.s32.f32 %v106
    %v235 = vcvt.s32.f32 %v107
    %v236 = vcvt.s32.f32 %v108
    %v237 = vcvt.s32.f32 %v109
    %v238 = vcvt.s32.f32 %v110
    %v239 = vcvt.s32.f32 %v111
    %v240 = vcvt.s32.f32 %v112
    %v241 = vcvt.s32.f32 %v113
    %v242 = vcvt.s32.f32 %v114
    %v243 = vcvt.s32.f32 %v115
    %v244 = vcvt.s32.f32 %v116
    %v245 = vcvt.s32.f32 %v117
    %v246 = vcvt.s32.f32 %v118
    %v247 = vcvt.s32.f32 %v119
    %v248 = vcvt.s32.f32 %v120
    %v249 = vcvt.s32.f32 %v121
    %v250 = vcvt.s32.f32 %v122
    %v251 = vcvt.s32.f32 %v123
    %v252 = vcvt.s32.f32 %v124
    %v253 = vcvt.s32.f32 %v125
    %v254 = vcvt.s32.f32 %v126
    %v255 = vcvt.s32.f32 %v127
    %v256 = vcvt.s32.f32 %v128
    %v257 = vcvt.s32.f32 %v129
    %v258 = vcvt.s32.f32 %v130
    %v259 = vcvt.s32.f32 %v131
    %v260 = vcvt.s32.f32 %v132
    %v261 = vcvt.s32.f32 %v133
    %v262 = vcvt.s32.f32 %v134
    %v263 = vcvt.s32.f32 %v135
    %v264 = vcvt.s32.f32 %v136
    %v265 = vcvt.s32.f32 %v137
    %v266 = vcvt.s32.f32 %v138
    %v267 = vcvt.s32.f32 %v139
    %v268 = vcvt.s32.f32 %v140
    %v269 = vcvt.s32.f32 %v141
    %v270 = vcvt.s32.f32 %v142
    %v271 = vcvt.s32.f32 %v143
    %v272 = vcvt.s32.f32 %v144
    %v273 = vcvt.s32.f32 %v145
    %v274 = vcvt.s32.f32 %v146
    %v275 = vcvt.s32.f32 %v147
    %v276 = vcvt.s32.f32 %v148
    %v277 = vcvt.s32.f32 %v149
    %v278 = vcvt.s32.f32 %v150
    %v279 = vcvt.s32.f32 %v151
    %v280 = vcvt.s32.f32 %v152
    %v281 = vcvt.s32.f32 %v153
    %v282 = vcvt.s32.f32 %v154
    %v283 = vcvt.s32.f32 %v155
    %v284 = vcvt.s32.f32 %v156
    %v285 = vcvt.s32.f32 %v157
    %v286 = vcvt.s32.f32 %v158
    %v287 = vcvt.s32.f32 %v159
    %v288 = vcvt.s32.f32 %v160
    %v289 = vcvt.s32.f32 %v161
    %v290 = vcvt.s32.f32 %v162
    %v291 = vcvt.s32.f32 %v163
    %v292 = vcvt.s32.f32 %v164
    %v293 = vcvt.s32.f32 %v165
    %v294 = vcvt.s32.f32 %v166
    %v295 = vcvt.s32.f32 %v167
    %v296 = vcvt.s32.f32 %v168
    %v297 = vcvt.s32.f32 %v169
    %v298 = vcvt.s32.f32 %v170
    %v299 = vcvt.s32.f32 %v171
    %v300 = vcvt.s32.f32 %v172
    %v301 = vcvt.s32.f32 %v173
    %v302 = vcvt.s32.f32 %v174
    %v303 = vcvt.s32.f32 %v175
    %v304 = vcvt.s32.f32 %v176
    %v305 = vcvt.s32.f32 %v177
    %v306 = vcvt.s32.f32 %v178
    %v307 = vpack.c.bf16 %v180, %v179
    %v308 = vpack.c.bf16 %v182, %v181
    %v309 = vpack.c.bf16 %v184, %v183
    %v310 = vpack.c.bf16 %v186, %v185
    %v311 = vpack.c.bf16 %v188, %v187
    %v312 = vpack.c.bf16 %v190, %v189
    %v313 = vpack.c.bf16 %v192, %v191
    %v314 = vpack.c.bf16 %v194, %v193
    %v315 = vpack.c.bf16 %v196, %v195
    %v316 = vpack.c.bf16 %v198, %v197
    %v317 = vpack.c.bf16 %v200, %v199
    %v318 = vpack.c.bf16 %v202, %v201
    %v319 = vpack.c.bf16 %v204, %v203
    %v320 = vpack.c.bf16 %v206, %v205
    %v321 = vpack.c.bf16 %v208, %v207
    %v322 = vpack.c.bf16 %v210, %v209
    %v323 = vpack.c.bf16 %v212, %v211
    %v324 = vpack.c.bf16 %v214, %v213
    %v325 = vpack.c.bf16 %v216, %v215
    %v326 = vpack.c.bf16 %v218, %v217
    %v327 = vpack.c.bf16 %v220, %v219
    %v328 = vpack.c.bf16 %v222, %v221
    %v329 = vpack.c.bf16 %v224, %v223
    %v330 = vpack.c.bf16 %v226, %v225
    %v331 = vpack.c.bf16 %v228, %v227
    %v332 = vpack.c.bf16 %v230, %v229
    %v333 = vpack.c.bf16 %v232, %v231
    %v334 = vpack.c.bf16 %v234, %v233
    %v335 = vpack.c.bf16 %v236, %v235
    %v336 = vpack.c.bf16 %v238, %v237
    %v337 = vpack.c.bf16 %v240, %v239
    %v338 = vpack.c.bf16 %v242, %v241
    %v339 = vpack.c.bf16 %v244, %v243
    %v340 = vpack.c.bf16 %v246, %v245
    %v341 = vpack.c.bf16 %v248, %v247
    %v342 = vpack.c.bf16 %v250, %v249
    %v343 = vpack.c.bf16 %v252, %v251
    %v344 = vpack.c.bf16 %v254, %v253
    %v345 = vpack.c.bf16 %v256, %v255
    %v346 = vpack.c.bf16 %v258, %v257
    %v347 = vpack.c.bf16 %v260, %v259
    %v348 = vpack.c.bf16 %v262, %v261
    %v349 = vpack.c.bf16 %v264, %v263
    %v350 = vpack.c.bf16 %v266, %v265
    %v351 = vpack.c.bf16 %v268, %v267
    %v352 = vpack.c.bf16 %v270, %v269
    %v353 = vpack.c.bf16 %v272, %v271
    %v354 = vpack.c.bf16 %v274, %v273
    %v355 = vpack.c.bf16 %v276, %v275
    %v356 = vpack.c.bf16 %v278, %v277
    %v357 = vpack.c.bf16 %v280, %v279
    %v358 = vpack.c.bf16 %v282, %v281
    %v359 = vpack.c.bf16 %v284, %v283
    %v360 = vpack.c.bf16 %v286, %v285
    %v361 = vpack.c.bf16 %v288, %v287
    %v362 = vpack.c.bf16 %v290, %v289
    %v363 = vpack.c.bf16 %v292, %v291
    %v364 = vpack.c.bf16 %v294, %v293
    %v365 = vpack.c.bf16 %v296, %v295
    %v366 = vpack.c.bf16 %v298, %v297
    %v367 = vpack.c.bf16 %v300, %v299
    %v368 = vpack.c.bf16 %v302, %v301
    %v369 = vpack.c.bf16 %v304, %v303
    %v370 = vpack.c.bf16 %v306, %v305
    %v371 = vld [vmem:[%s0] sm:$0xf]
    %vm372 = vcmask 523264
    %v374 = vsel %vm372, %v371, 0
    %v377 = vsel %vm372, %v307, 0
    %v380 = vsel %vm372, %v308, 0
    %v383 = vsel %vm372, %v309, 0
    %v386 = vsel %vm372, %v310, 0
    %v389 = vsel %vm372, %v311, 0
    %v392 = vsel %vm372, %v312, 0
    %v395 = vsel %vm372, %v313, 0
    %v398 = vsel %vm372, %v314, 0
    %v401 = vsel %vm372, %v315, 0
    %v404 = vsel %vm372, %v316, 0
    %v407 = vsel %vm372, %v317, 0
    %v410 = vsel %vm372, %v318, 0
    %v413 = vsel %vm372, %v319, 0
    %v416 = vsel %vm372, %v320, 0
    %v419 = vsel %vm372, %v321, 0
    %v422 = vsel %vm372, %v322, 0
    %v425 = vsel %vm372, %v323, 0
    %v428 = vsel %vm372, %v324, 0
    %v431 = vsel %vm372, %v325, 0
    %v434 = vsel %vm372, %v326, 0
    %v437 = vsel %vm372, %v327, 0
    %v440 = vsel %vm372, %v328, 0
    %v443 = vsel %vm372, %v329, 0
    %v446 = vsel %vm372, %v330, 0
    %v449 = vsel %vm372, %v331, 0
    %v452 = vsel %vm372, %v332, 0
    %v455 = vsel %vm372, %v333, 0
    %v458 = vsel %vm372, %v334, 0
    %v461 = vsel %vm372, %v335, 0
    %v464 = vsel %vm372, %v336, 0
    %v467 = vsel %vm372, %v337, 0
    %v470 = vsel %vm372, %v338, 0
    %v473 = vsel %vm372, %v339, 0
    %v476 = vsel %vm372, %v340, 0
    %v479 = vsel %vm372, %v341, 0
    %v482 = vsel %vm372, %v342, 0
    %v485 = vsel %vm372, %v343, 0
    %v488 = vsel %vm372, %v344, 0
    %v491 = vsel %vm372, %v345, 0
    %v494 = vsel %vm372, %v346, 0
    %v497 = vsel %vm372, %v347, 0
    %v500 = vsel %vm372, %v348, 0
    %v503 = vsel %vm372, %v349, 0
    %v506 = vsel %vm372, %v350, 0
    %v509 = vsel %vm372, %v351, 0
    %v512 = vsel %vm372, %v352, 0
    %v515 = vsel %vm372, %v353, 0
    %v518 = vsel %vm372, %v354, 0
    %v521 = vsel %vm372, %v355, 0
    %v524 = vsel %vm372, %v356, 0
    %v527 = vsel %vm372, %v357, 0
    %v530 = vsel %vm372, %v358, 0
    %v533 = vsel %vm372, %v359, 0
    %v536 = vsel %vm372, %v360, 0
    %v539 = vsel %vm372, %v361, 0
    %v542 = vsel %vm372, %v362, 0
    %v545 = vsel %vm372, %v363, 0
    %v548 = vsel %vm372, %v364, 0
    %v551 = vsel %vm372, %v365, 0
    %v554 = vsel %vm372, %v366, 0
    %v557 = vsel %vm372, %v367, 0
    %v560 = vsel %vm372, %v368, 0
    %v563 = vsel %vm372, %v369, 0
    %v566 = vsel %vm372, %v370, 0
    %568 = vmatpush.bf16.xpose.msra.mxu0 %v398
    %569 = vmatpush.bf16.xpose.msra.mxu0 %v395
    %570 = vmatpush.bf16.xpose.msra.mxu0 %v392
    %571 = vmatpush.bf16.xpose.msra.mxu0 %v389
    %572 = vmatpush.bf16.xpose.msra.mxu0 %v386
    %573 = vmatpush.bf16.xpose.msra.mxu0 %v383
    %574 = vmatpush.bf16.xpose.msra.mxu0 %v380
    %575 = vmatpush.bf16.xpose.msra.mxu0 %v377
    %576 = vmatmul.bf16.gmra.mxu0 %v374
    %v577 = vpop.f32.mrf.mxu0
    %v578 = vadd.f32 0.0, %v577
    %v579 = vpop.f32.mrf.mxu0
    %580 = vdwg.mxu0
    %581 = vmatpush.bf16.xpose.msra.mxu0 %v422
    %582 = vmatpush.bf16.xpose.msra.mxu0 %v419
    %583 = vmatpush.bf16.xpose.msra.mxu0 %v416
    %584 = vmatpush.bf16.xpose.msra.mxu0 %v413
    %585 = vmatpush.bf16.xpose.msra.mxu0 %v410
    %586 = vmatpush.bf16.xpose.msra.mxu0 %v407
    %587 = vmatpush.bf16.xpose.msra.mxu0 %v404
    %588 = vmatpush.bf16.xpose.msra.mxu0 %v401
    %589 = vmatmul.bf16.gmra.mxu0 %v374
    %v590 = vpop.f32.mrf.mxu0
    %v591 = vadd.f32 0.0, %v590
    %v592 = vpop.f32.mrf.mxu0
    %593 = vdwg.mxu0
    %594 = vmatpush.bf16.xpose.msra.mxu0 %v446
    %595 = vmatpush.bf16.xpose.msra.mxu0 %v443
    %596 = vmatpush.bf16.xpose.msra.mxu0 %v440
    %597 = vmatpush.bf16.xpose.msra.mxu0 %v437
    %598 = vmatpush.bf16.xpose.msra.mxu0 %v434
    %599 = vmatpush.bf16.xpose.msra.mxu0 %v431
    %600 = vmatpush.bf16.xpose.msra.mxu0 %v428
    %601 = vmatpush.bf16.xpose.msra.mxu0 %v425
    %602 = vmatmul.bf16.gmra.mxu0 %v374
    %v603 = vpop.f32.mrf.mxu0
    %v604 = vadd.f32 0.0, %v603
    %v605 = vpop.f32.mrf.mxu0
    %606 = vdwg.mxu0
    %607 = vmatpush.bf16.xpose.msra.mxu0 %v470
    %608 = vmatpush.bf16.xpose.msra.mxu0 %v467
    %609 = vmatpush.bf16.xpose.msra.mxu0 %v464
    %610 = vmatpush.bf16.xpose.msra.mxu0 %v461
    %611 = vmatpush.bf16.xpose.msra.mxu0 %v458
    %612 = vmatpush.bf16.xpose.msra.mxu0 %v455
    %613 = vmatpush.bf16.xpose.msra.mxu0 %v452
    %614 = vmatpush.bf16.xpose.msra.mxu0 %v449
    %615 = vmatmul.bf16.gmra.mxu0 %v374
    %v616 = vpop.f32.mrf.mxu0
    %v617 = vadd.f32 0.0, %v616
    %v618 = vpop.f32.mrf.mxu0
    %619 = vdwg.mxu0
    %620 = vmatpush.bf16.xpose.msra.mxu0 %v494
    %621 = vmatpush.bf16.xpose.msra.mxu0 %v491
    %622 = vmatpush.bf16.xpose.msra.mxu0 %v488
    %623 = vmatpush.bf16.xpose.msra.mxu0 %v485
    %624 = vmatpush.bf16.xpose.msra.mxu0 %v482
    %625 = vmatpush.bf16.xpose.msra.mxu0 %v479
    %626 = vmatpush.bf16.xpose.msra.mxu0 %v476
    %627 = vmatpush.bf16.xpose.msra.mxu0 %v473
    %628 = vmatmul.bf16.gmra.mxu0 %v374
    %v629 = vpop.f32.mrf.mxu0
    %v630 = vadd.f32 0.0, %v629
    %v631 = vpop.f32.mrf.mxu0
    %632 = vdwg.mxu0
    %633 = vmatpush.bf16.xpose.msra.mxu0 %v518
    %634 = vmatpush.bf16.xpose.msra.mxu0 %v515
    %635 = vmatpush.bf16.xpose.msra.mxu0 %v512
    %636 = vmatpush.bf16.xpose.msra.mxu0 %v509
    %637 = vmatpush.bf16.xpose.msra.mxu0 %v506
    %638 = vmatpush.bf16.xpose.msra.mxu0 %v503
    %639 = vmatpush.bf16.xpose.msra.mxu0 %v500
    %640 = vmatpush.bf16.xpose.msra.mxu0 %v497
    %641 = vmatmul.bf16.gmra.mxu0 %v374
    %v642 = vpop.f32.mrf.mxu0
    %v643 = vadd.f32 0.0, %v642
    %v644 = vpop.f32.mrf.mxu0
    %645 = vdwg.mxu0
    %646 = vmatpush.bf16.xpose.msra.mxu0 %v542
    %647 = vmatpush.bf16.xpose.msra.mxu0 %v539
    %648 = vmatpush.bf16.xpose.msra.mxu0 %v536
    %649 = vmatpush.bf16.xpose.msra.mxu0 %v533
    %650 = vmatpush.bf16.xpose.msra.mxu0 %v530
    %651 = vmatpush.bf16.xpose.msra.mxu0 %v527
    %652 = vmatpush.bf16.xpose.msra.mxu0 %v524
    %653 = vmatpush.bf16.xpose.msra.mxu0 %v521
    %654 = vmatmul.bf16.gmra.mxu0 %v374
    %v655 = vpop.f32.mrf.mxu0
    %v656 = vadd.f32 0.0, %v655
    %v657 = vpop.f32.mrf.mxu0
    %658 = vdwg.mxu0
    %659 = vmatpush.bf16.xpose.msra.mxu0 %v566
    %660 = vmatpush.bf16.xpose.msra.mxu0 %v563
    %661 = vmatpush.bf16.xpose.msra.mxu0 %v560
    %662 = vmatpush.bf16.xpose.msra.mxu0 %v557
    %663 = vmatpush.bf16.xpose.msra.mxu0 %v554
    %664 = vmatpush.bf16.xpose.msra.mxu0 %v551
    %665 = vmatpush.bf16.xpose.msra.mxu0 %v548
    %666 = vmatpush.bf16.xpose.msra.mxu0 %v545
    %667 = vmatmul.bf16.gmra.mxu0 %v374
    %v668 = vpop.f32.mrf.mxu0
    %v669 = vadd.f32 0.0, %v668
    %v670 = vpop.f32.mrf.mxu0
    %671 = vdwg.mxu0
    %v672 = vld [vmem:[%s2] sm:$0xff]
    %v674 = vperm.slane %v672, 0
    %v675 = vperm.slane %v672, 1
    %v676 = vperm.slane %v672, 2
    %v677 = vperm.slane %v672, 3
    %v678 = vperm.slane %v672, 4
    %v679 = vperm.slane %v672, 5
    %v680 = vperm.slane %v672, 6
    %v681 = vperm.slane %v672, 7
    %v690 = vmul.f32 %v578, %v674
    %v691 = vmul.f32 %v591, %v675
    %v692 = vmul.f32 %v604, %v676
    %v693 = vmul.f32 %v617, %v677
    %v694 = vmul.f32 %v630, %v678
    %v695 = vmul.f32 %v643, %v679
    %v696 = vmul.f32 %v656, %v680
    %v697 = vmul.f32 %v669, %v681
    %v698 = vld [vmem:[%s3] sm:$0xff]
    %v700 = vperm.slane %v698, 0
    %v701 = vperm.slane %v698, 1
    %v702 = vperm.slane %v698, 2
    %v703 = vperm.slane %v698, 3
    %v704 = vperm.slane %v698, 4
    %v705 = vperm.slane %v698, 5
    %v706 = vperm.slane %v698, 6
    %v707 = vperm.slane %v698, 7
    %v716 = vadd.f32 %v690, %v700
    %v717 = vadd.f32 %v691, %v701
    %v718 = vadd.f32 %v692, %v702
    %v719 = vadd.f32 %v693, %v703
    %v720 = vadd.f32 %v694, %v704
    %v721 = vadd.f32 %v695, %v705
    %v722 = vadd.f32 %v696, %v706
    %v723 = vadd.f32 %v697, %v707
    %v724 = vpack.c.bf16 %v717, %v716
    %v725 = vpack.c.bf16 %v719, %v718
    %v726 = vpack.c.bf16 %v721, %v720
    %v727 = vpack.c.bf16 %v723, %v722
    %v728 = vxor.u32 %v724, 2147516416
    %v729 = vxor.u32 %v725, 2147516416
    %v730 = vxor.u32 %v726, 2147516416
    %v731 = vxor.u32 %v727, 2147516416
    %v732 = vunpack.c.l.bf16 %v728
    %v733 = vunpack.c.h.bf16 %v728
    %v734 = vunpack.c.l.bf16 %v729
    %v735 = vunpack.c.h.bf16 %v729
    %v736 = vunpack.c.l.bf16 %v730
    %v737 = vunpack.c.h.bf16 %v730
    %v738 = vunpack.c.l.bf16 %v731
    %v739 = vunpack.c.h.bf16 %v731
    %v740 = vmul.f32 %v732, 1.442695
    %v741 = vpow.pop %v740
    %v742 = vmul.f32 %v733, 1.442695
    %v743 = vpow.pop %v742
    %v744 = vmul.f32 %v734, 1.442695
    %v745 = vpow.pop %v744
    %v746 = vmul.f32 %v735, 1.442695
    %v747 = vpow.pop %v746
    %v748 = vmul.f32 %v736, 1.442695
    %v749 = vpow.pop %v748
    %v750 = vmul.f32 %v737, 1.442695
    %v751 = vpow.pop %v750
    %v752 = vmul.f32 %v738, 1.442695
    %v753 = vpow.pop %v752
    %v754 = vmul.f32 %v739, 1.442695
    %v755 = vpow.pop %v754
    %v756 = vpack.c.bf16 %v743, %v741
    %v757 = vpack.c.bf16 %v747, %v745
    %v758 = vpack.c.bf16 %v751, %v749
    %v759 = vpack.c.bf16 %v755, %v753
    %v760 = vunpack.c.l.bf16 %v756
    %v761 = vunpack.c.h.bf16 %v756
    %v762 = vunpack.c.l.bf16 %v757
    %v763 = vunpack.c.h.bf16 %v757
    %v764 = vunpack.c.l.bf16 %v758
    %v765 = vunpack.c.h.bf16 %v758
    %v766 = vunpack.c.l.bf16 %v759
    %v767 = vunpack.c.h.bf16 %v759
    %v768 = vadd.f32 %v760, 1.0
    %v769 = vadd.f32 %v761, 1.0
    %v770 = vadd.f32 %v762, 1.0
    %v771 = vadd.f32 %v763, 1.0
    %v772 = vadd.f32 %v764, 1.0
    %v773 = vadd.f32 %v765, 1.0
    %v774 = vadd.f32 %v766, 1.0
    %v775 = vadd.f32 %v767, 1.0
    %v776 = vpack.c.bf16 %v769, %v768
    %v777 = vpack.c.bf16 %v771, %v770
    %v778 = vpack.c.bf16 %v773, %v772
    %v779 = vpack.c.bf16 %v775, %v774
    %v780 = vunpack.c.h.bf16 1065369472
    %v781 = vunpack.c.l.bf16 1065369472
    %v782 = vunpack.c.h.bf16 %v776
    %v783 = vunpack.c.l.bf16 %v776
    %v784 = vrcp.pop %v782
    %v785 = vmul.f32 %v780, %v784
    %v786 = vrcp.pop %v783
    %v787 = vmul.f32 %v781, %v786
    %v788 = vpack.c.bf16 %v785, %v787
    %v789 = vunpack.c.h.bf16 %v777
    %v790 = vunpack.c.l.bf16 %v777
    %v791 = vrcp.pop %v789
    %v792 = vmul.f32 %v780, %v791
    %v793 = vrcp.pop %v790
    %v794 = vmul.f32 %v781, %v793
    %v795 = vpack.c.bf16 %v792, %v794
    %v796 = vunpack.c.h.bf16 %v778
    %v797 = vunpack.c.l.bf16 %v778
    %v798 = vrcp.pop %v796
    %v799 = vmul.f32 %v780, %v798
    %v800 = vrcp.pop %v797
    %v801 = vmul.f32 %v781, %v800
    %v802 = vpack.c.bf16 %v799, %v801
    %v803 = vunpack.c.h.bf16 %v779
    %v804 = vunpack.c.l.bf16 %v779
    %v805 = vrcp.pop %v803
    %v806 = vmul.f32 %v780, %v805
    %v807 = vrcp.pop %v804
    %v808 = vmul.f32 %v781, %v807
    %v809 = vpack.c.bf16 %v806, %v808
    %810 = vst [vmem:[#allocation2] sm:$0xff] %v788
    %811 = vst [vmem:[#allocation2 + $0x8] sm:$0xff] %v795
    %812 = vst [vmem:[#allocation2 + $0x10] sm:$0xff] %v802
    %813 = vst [vmem:[#allocation2 + $0x18] sm:$0xff] %v809
    // Predicated region
    $region18: #{mobius_e_forward.1} parent=1 // pred_check
      _
    $region19: #{mobius_e_forward.1} parent=1 // pred_check_branch
      %815 = sbr.rel (0) target = $region21
    $region20: #{mobius_e_forward.1} parent=1 // pred_region
      %817 = vsyncadd [#allocation3], 0
      %s819 = sshll.u32 [#allocation2], 4
      %s820 = int_to_ptr.vmem [resolvable:$true] %s819
      %s821 = sshll.u32 %s4, 4
      %s822 = int_to_ptr.hbm [resolvable:$true] %s821
      %824 = dma.vmem_to_hbm [thread:$0]  %s820, 512, %s822, [#allocation3]
    $region21: #{mobius_e_forward.1} parent=1 // pred_fallthru
      _
    // Predicated region
    $region22: #{mobius_e_forward.1} parent=1 // pred_check
      _
    $region23: #{mobius_e_forward.1} parent=1 // pred_check_branch
      %826 = sbr.rel (0) target = $region25
    $region24: #{mobius_e_forward.1} parent=1 // pred_region
      %828 = dma.done [#allocation3], 512
    $region25: #{mobius_e_forward.1} parent=1 // pred_fallthru
      _
    %829 = vsyncpa [#allocation3], 1

</llo_original>
